<compile_context>
chip_gen: v7x
topology: tpu7x:2x2x1
jax: 0.10.0
libtpu: 0.0.40
codegen_flags: <defaults>
</compile_context>

<pallas_src>
import functools

import jax
import jax.numpy as jnp
from jax import lax
from jax.experimental import pallas as pl
from jax.experimental.pallas import tpu as pltpu

HIDDEN = 200        # logical hidden width (nn.Linear(input_n, 200))
HIDDEN_PAD = 256    # padded to a multiple of 128 lanes / native MXU width
OUT = 4
TILE_B_MAX = 4096   # batch-tile cap; f32 footprint @ input_n=32:
                    #   2 * tile_b * input_n * 4B   (x, double buffered)  ~1 MiB
                    # + 2 * OUT * tile_b * 4B       (out, double buffered) ~128 KiB
                    # + resident weights (~40 KiB)  -> well under every VMEM limit.
CHUNK = 128         # in-kernel M chunk: (128, 256) f32 hidden = 32 vregs.


def _round_up(n, m):
    return (n + m - 1) // m * m


def _mlp_kernel(x_ref, w1_ref, b1_ref, w2t_ref, b2t_ref, o_ref,
                *, n_chunks, chunk_rows):
    # Resident operands: load once per grid step, keep in vregs (w1: 8 vregs,
    # w2t: 1 vreg for input_n=32).
    w1 = w1_ref[...]          # (input_n, 256), f32 or bf16
    b1 = b1_ref[...]          # (1, 256), f32
    w2t = w2t_ref[...]        # (4, 256), f32
    b2t = b2t_ref[...]        # (4, 1), f32

    def compute(rows):
        xs = x_ref[rows, :]                                   # (chunk, input_n)
        # First linear on the MXU, f32 accumulation.
        h = jnp.dot(xs, w1, preferred_element_type=jnp.float32)
        # Bias + ReLU on the VPU in f32.
        h = jnp.maximum(h + b1, 0.0)                          # (chunk, 256)
        # Second linear as w2t @ h^T (A @ B^T pattern) so the result is
        # (4, chunk): lane-dense along the batch dim for the writeback.
        y_t = lax.dot_general(w2t, h, (((1,), (1,)), ((), ())),
                              preferred_element_type=jnp.float32)
        return y_t + b2t                                      # (4, chunk)

    if n_chunks == 1:
        o_ref[...] = compute(pl.ds(0, chunk_rows))
    else:
        def body(c, carry):
            r0 = pl.multiple_of(c * chunk_rows, chunk_rows)
            o_ref[:, pl.ds(r0, chunk_rows)] = compute(pl.ds(r0, chunk_rows))
            return carry

        lax.fori_loop(0, n_chunks, body, 0, unroll=4)


def prepare_weights(w1, b1, w2, b2, *, matmul_dtype=jnp.float32):
    """Pad hidden 200->256, cast, and pre-transpose w2. Call ONCE and reuse
    across forward calls (keeps pad/cast off the per-call path).

    Padded hidden columns of w1/b1 are exactly 0 through the ReLU and hit
    zeroed rows of w2, so the padded math equals the unpadded math."""
    pad_h = HIDDEN_PAD - w1.shape[1]
    w1p = jnp.pad(w1.astype(jnp.float32), ((0, 0), (0, pad_h)))
    w1p = w1p.astype(matmul_dtype)                              # (input_n, 256)
    b1p = jnp.pad(jnp.reshape(b1.astype(jnp.float32), (1, -1)),
                  ((0, 0), (0, pad_h)))                         # (1, 256) f32
    w2t = jnp.pad(w2.astype(jnp.float32), ((0, pad_h), (0, 0))).T  # (4, 256) f32
    b2t = jnp.reshape(b2.astype(jnp.float32), (-1, 1))          # (4, 1) f32
    return w1p, b1p, w2t, b2t


def super_ai_forward(x, w1p, b1p, w2t, b2t):
    """x: (B, input_n); prepared weights from prepare_weights().
    Returns (B, 4) f32 == relu(x @ w1 + b1) @ w2 + b2 (the PyTorch forward)."""
    B, input_n = x.shape
    x = x.astype(w1p.dtype)   # bf16 operands iff weights were prepared as bf16

    # Batch tile: >= 2 tiles whenever B > 128 (feeds both v7x TensorCores) and
    # a multiple of 128 when multiple tiles exist (lane-dense ragged blocking).
    if B <= CHUNK:
        tile_b = B                                       # single full-extent tile
    else:
        tile_b = min(TILE_B_MAX, _round_up(-(-B // 2), CHUNK))
    n_tiles = -(-B // tile_b)                            # ragged last tile is OK
    if tile_b % CHUNK == 0 and tile_b > CHUNK:
        n_chunks, chunk_rows = tile_b // CHUNK, CHUNK
    else:
        n_chunks, chunk_rows = 1, tile_b

    kernel = functools.partial(_mlp_kernel, n_chunks=n_chunks,
                               chunk_rows=chunk_rows)

    elt = x.dtype.itemsize
    flops = 2 * B * (input_n * HIDDEN_PAD + HIDDEN_PAD * OUT)
    bytes_accessed = (B * input_n * elt                  # x read (dominant)
                      + B * OUT * 4                      # out write
                      + w1p.size * elt + b1p.size * 4
                      + w2t.size * 4 + b2t.size * 4)

    out_t = pl.pallas_call(
        kernel,
        out_shape=jax.ShapeDtypeStruct((OUT, B), jnp.float32),
        grid=(n_tiles,),
        in_specs=[
            # x: pipelined per batch tile (auto double-buffered DMA).
            pl.BlockSpec((tile_b, input_n), lambda i: (i, 0)),
            # Weights / biases: constant index_map -> resident in VMEM.
            pl.BlockSpec((input_n, HIDDEN_PAD), lambda i: (0, 0)),
            pl.BlockSpec((1, HIDDEN_PAD), lambda i: (0, 0)),
            pl.BlockSpec((OUT, HIDDEN_PAD), lambda i: (0, 0)),
            pl.BlockSpec((OUT, 1), lambda i: (0, 0)),
        ],
        # Transposed output: last dim is the batch tile -> unmasked, dense vst
        # and a dense output DMA instead of 16-useful-bytes-per-row writes.
        out_specs=pl.BlockSpec((OUT, tile_b), lambda i: (0, i)),
        compiler_params=pltpu.CompilerParams(
            # Independent batch tiles: shard across both TensorCores on v7x.
            dimension_semantics=("parallel",),
            vmem_limit_bytes=32 * 1024 * 1024,
        ),
        cost_estimate=pl.CostEstimate(
            flops=flops, transcendentals=0, bytes_accessed=bytes_accessed
        ),
    )(x, w1p, b1p, w2t, b2t)

    # Tiny (4, B) -> (B, 4) relayout in XLA (B*16 bytes; negligible vs. x).
    return out_t.T


def init_params(key, input_n):
    """Deterministic init mimicking PyTorch nn.Linear default
    (uniform(-1/sqrt(fan_in), 1/sqrt(fan_in)))."""
    k1, k2, k3, k4 = jax.random.split(key, 4)
    bound1 = 1.0 / jnp.sqrt(jnp.float32(input_n))
    bound2 = 1.0 / jnp.sqrt(jnp.float32(HIDDEN))
    w1 = jax.random.uniform(k1, (input_n, HIDDEN), jnp.float32, -bound1, bound1)
    b1 = jax.random.uniform(k2, (1, HIDDEN), jnp.float32, -bound1, bound1)
    w2 = jax.random.uniform(k3, (HIDDEN, OUT), jnp.float32, -bound2, bound2)
    b2 = jax.random.uniform(k4, (1, OUT), jnp.float32, -bound2, bound2)
    return w1, b1, w2, b2


if __name__ == "__main__":
    key = jax.random.PRNGKey(0)
    k_x, k_p = jax.random.split(key)

    batch, input_n = 8, 32
    x = jax.random.normal(k_x, (batch, input_n), dtype=jnp.float32)
    w1, b1, w2, b2 = init_params(k_p, input_n)

    # Pure-JAX reference (same math, f32, unpadded weights).
    ref = jnp.maximum(x @ w1 + b1, 0.0) @ w2 + b2

    # Default f32 path (closest to the f64 PyTorch module).
    params_f32 = prepare_weights(w1, b1, w2, b2, matmul_dtype=jnp.float32)
    out = jax.block_until_ready(super_ai_forward(x, *params_f32))
    assert out.shape == (batch, OUT)
    assert jnp.allclose(out, ref, atol=1e-5, rtol=1e-5)

    # Optional bf16-operand path (halves x HBM traffic, skips f32 MXU
    # emulation); f32 accumulation keeps error small but tolerance is looser.
    params_bf16 = prepare_weights(w1, b1, w2, b2, matmul_dtype=jnp.bfloat16)
    out_bf16 = jax.block_until_ready(super_ai_forward(x, *params_bf16))
    assert jnp.allclose(out_bf16, ref, atol=2e-2, rtol=2e-2)

    # Exercise the multi-tile, ragged, in-kernel-chunked path (B=1000 ->
    # tile_b=512, 2 grid steps, ragged last tile, 4 chunks per tile).
    big_b = 1000
    xb = jax.random.normal(k_x, (big_b, input_n), dtype=jnp.float32)
    outb = jax.block_until_ready(super_ai_forward(xb, *params_f32))
    refb = jnp.maximum(xb @ w1 + b1, 0.0) @ w2 + b2
    assert outb.shape == (big_b, OUT)
    assert jnp.allclose(outb, refb, atol=1e-4, rtol=1e-4)

    # TODO(synk): float64 compute (module uses .to(torch.float64)) has no TPU
    # Pallas equivalent; kernel runs in float32 (optional bf16 operands).
    print("KERNEL_OK")
</pallas_src>

<mosaic_0001>
module attributes {stable_mosaic.version = 11 : i64} {
  func.func @_mlp_kernel(%arg0: i32, %arg1: memref<8x32xf32, #tpu.memory_space<vmem>>, %arg2: memref<32x256xf32, #tpu.memory_space<vmem>>, %arg3: memref<1x256xf32, #tpu.memory_space<vmem>>, %arg4: memref<4x256xf32, #tpu.memory_space<vmem>>, %arg5: memref<4x1xf32, #tpu.memory_space<vmem>>, %arg6: memref<4x8xf32, #tpu.memory_space<vmem>>) attributes {dimension_semantics = [#tpu.dimension_semantics<parallel>], iteration_bounds = array<i64: 1>, scalar_prefetch = 0 : i64, scratch_operands = 0 : i64, tpu.core_type = #tpu.core_type<tc>, window_params = [{transform_indices = @transform_0, window_bounds = array<i64: 8, 32>}, {pipeline_mode = #tpu.pipeline_mode<synchronous>, transform_indices = @transform_1, window_bounds = array<i64: 32, 256>}, {pipeline_mode = #tpu.pipeline_mode<synchronous>, transform_indices = @transform_2, window_bounds = array<i64: 1, 256>}, {pipeline_mode = #tpu.pipeline_mode<synchronous>, transform_indices = @transform_3, window_bounds = array<i64: 4, 256>}, {pipeline_mode = #tpu.pipeline_mode<synchronous>, transform_indices = @transform_4, window_bounds = array<i64: 4, 1>}, {transform_indices = @transform_5, window_bounds = array<i64: 4, 8>}]} {
    %c0 = arith.constant 0 : index
    %c0_0 = arith.constant 0 : index
    %0 = vector.load %arg2[%c0, %c0_0] : memref<32x256xf32, #tpu.memory_space<vmem>>, vector<32x256xf32>
    %c0_1 = arith.constant 0 : index
    %c0_2 = arith.constant 0 : index
    %1 = vector.load %arg3[%c0_1, %c0_2] : memref<1x256xf32, #tpu.memory_space<vmem>>, vector<1x256xf32>
    %c0_3 = arith.constant 0 : index
    %c0_4 = arith.constant 0 : index
    %2 = vector.load %arg4[%c0_3, %c0_4] : memref<4x256xf32, #tpu.memory_space<vmem>>, vector<4x256xf32>
    %c0_5 = arith.constant 0 : index
    %c0_6 = arith.constant 0 : index
    %3 = vector.load %arg5[%c0_5, %c0_6] : memref<4x1xf32, #tpu.memory_space<vmem>>, vector<4x1xf32>
    %c0_7 = arith.constant 0 : index
    %c0_8 = arith.constant 0 : index
    %4 = vector.load %arg1[%c0_7, %c0_8] : memref<8x32xf32, #tpu.memory_space<vmem>>, vector<8x32xf32>
    %cst = arith.constant dense<0.000000e+00> : vector<8x256xf32>
    %5 = tpu.matmul %4, %0, %cst {dimension_numbers = #tpu.dot_dimension_numbers<[1], [0], [0], [1], [0, 0, 1, 1], [], []>} : vector<8x32xf32>, vector<32x256xf32>, vector<8x256xf32> -> vector<8x256xf32>
    %6 = vector.broadcast %1 : vector<1x256xf32> to vector<8x256xf32>
    %7 = arith.addf %5, %6 : vector<8x256xf32>
    %cst_9 = arith.constant 0.000000e+00 : f32
    %8 = vector.broadcast %cst_9 : f32 to vector<8x256xf32>
    %9 = arith.maximumf %7, %8 : vector<8x256xf32>
    %cst_10 = arith.constant dense<0.000000e+00> : vector<4x8xf32>
    %10 = tpu.matmul %2, %9, %cst_10 {dimension_numbers = #tpu.dot_dimension_numbers<[1], [1], [0], [0], [0, 0, 1, 0], [], []>} : vector<4x256xf32>, vector<8x256xf32>, vector<4x8xf32> -> vector<4x8xf32>
    %11 = vector.broadcast %3 : vector<4x1xf32> to vector<4x8xf32>
    %12 = arith.addf %10, %11 : vector<4x8xf32>
    %c0_11 = arith.constant 0 : index
    %c0_12 = arith.constant 0 : index
    %13 = vector.load %arg6[%c0_11, %c0_12] : memref<4x8xf32, #tpu.memory_space<vmem>>, vector<4x8xf32>
    tpu.vector_store %arg6[%c0_11, %c0_12], %12 {strides = array<i32>} : memref<4x8xf32, #tpu.memory_space<vmem>>, vector<4x8xf32>,
    return
  }
  func.func @transform_0(%arg0: i32) -> (i32, i32) {
    %c0_i32 = arith.constant 0 : i32
    %c0_i32_0 = arith.constant 0 : i32
    return %arg0, %c0_i32 : i32, i32
  }
  func.func @transform_1(%arg0: i32) -> (i32, i32) {
    %c0_i32 = arith.constant 0 : i32
    %c0_i32_0 = arith.constant 0 : i32
    %c0_i32_1 = arith.constant 0 : i32
    return %c0_i32, %c0_i32_0 : i32, i32
  }
  func.func @transform_2(%arg0: i32) -> (i32, i32) {
    %c0_i32 = arith.constant 0 : i32
    %c0_i32_0 = arith.constant 0 : i32
    %c0_i32_1 = arith.constant 0 : i32
    return %c0_i32, %c0_i32_0 : i32, i32
  }
  func.func @transform_3(%arg0: i32) -> (i32, i32) {
    %c0_i32 = arith.constant 0 : i32
    %c0_i32_0 = arith.constant 0 : i32
    %c0_i32_1 = arith.constant 0 : i32
    return %c0_i32, %c0_i32_0 : i32, i32
  }
  func.func @transform_4(%arg0: i32) -> (i32, i32) {
    %c0_i32 = arith.constant 0 : i32
    %c0_i32_0 = arith.constant 0 : i32
    %c0_i32_1 = arith.constant 0 : i32
    return %c0_i32, %c0_i32_0 : i32, i32
  }
  func.func @transform_5(%arg0: i32) -> (i32, i32) {
    %c0_i32 = arith.constant 0 : i32
    %c0_i32_0 = arith.constant 0 : i32
    return %c0_i32, %arg0 : i32, i32
  }
}

</mosaic_0001>

<llo_original>
// kernel: tpu_custom_call.1
$region0: #{tpu_custom_call.1}
  #allocation0 [shape = 'u32[]', space=smem, size = 0x4, offset = 0x4, fixed_abs, tag = 'smem constant byte address 0x4 - core index']
  #allocation1 [shape = 'u32[144,128]{1,0:T(1,128)}', space=vmem, size = 0x12000, scoped, tag = 'internal scratch']
  %s0 = inlined_call_operand.hbm [shape: f32[8,32], index: 0, kind: input, shape index: {}]
  %s1 = inlined_call_operand.hbm [shape: f32[32,256], index: 1, kind: input, shape index: {}]
  %s2 = inlined_call_operand.vmem [shape: f32[1,256], index: 2, kind: input, shape index: {}]
  %s3 = inlined_call_operand.vmem [shape: f32[4,256], index: 3, kind: input, shape index: {}]
  %s4 = inlined_call_operand.vmem [shape: f32[4,1], index: 4, kind: input, shape index: {}]
  %s5 = inlined_call_operand.hbm [shape: f32[4,8], index: 5, kind: output, shape index: {}]
  %s6 = sld [smem:[#allocation0]]
  $region38: #{tpu_custom_call.1} parent=0
    _
  %s8 = ssub.s32 1, %s6
  %s9 = scalar_select 0, %s8, %s6
  $region1: #{tpu_custom_call.1} parent=0
    #allocation2 [shape = 'u8[4096]{0}', space=vmem, size = 0x1000, scoped, tag = 'input window, operand 0, single buffered']
    #allocation3 [shape = 's32[1]{0}', space=sflag, size = 0x4, scoped, tag = 'scoped memory for tpu_custom_call.1']
    #allocation4 [shape = 's32[1]{0}', space=sflag, size = 0x4, scoped, tag = 'scoped memory for tpu_custom_call.1']
    #allocation5 [shape = 'u8[32768]{0}', space=vmem, size = 0x8000, scoped, tag = 'input window, operand 1, single buffered']
    #allocation6 [shape = 's32[1]{0}', space=sflag, size = 0x4, scoped, tag = 'scoped memory for tpu_custom_call.1']
    #allocation7 [shape = 'u8[2048]{0}', space=vmem, size = 0x800, scoped, tag = 'output window, operand 0, single buffered']
    %10 = vsyncpa [#allocation3], 0
    %11 = vsyncpa [#allocation6], 0
    %12 = vsyncpa [#allocation4], 0
    // Predicated region
    $region2: #{tpu_custom_call.1} parent=1 // pred_check
      _
    $region3: #{tpu_custom_call.1} parent=1 // pred_check_branch
      %14 = sbr.rel (0) target = $region5
    $region4: #{tpu_custom_call.1} parent=1 // pred_region
      %s16 = ssub.s32 128, 128
      %17 = vsyncadd [#allocation3], %s16
      %s19 = sshll.u32 [#allocation2], 4
      %s20 = int_to_ptr.vmem [resolvable:$true] %s19
      %22 = dma.hbm_to_vmem [thread:$0]  %s0, 128, %s20, [#allocation3]
    $region5: #{tpu_custom_call.1} parent=1 // pred_fallthru
      _
    // Predicated region
    $region6: #{tpu_custom_call.1} parent=1 // pred_check
      _
    $region7: #{tpu_custom_call.1} parent=1 // pred_check_branch
      %24 = sbr.rel (0) target = $region9
    $region8: #{tpu_custom_call.1} parent=1 // pred_region
      %s26 = ssub.s32 1024, 1024
      %27 = vsyncadd [#allocation6], %s26
      %s28 = sshll.u32 [#allocation5], 4
      %s29 = int_to_ptr.vmem [resolvable:$true] %s28
      %34 = dma.hbm_to_vmem [thread:$0]  %s1, 1024, %s29, [#allocation6], 256, 256, 16
    $region9: #{tpu_custom_call.1} parent=1 // pred_fallthru
      _
    // Predicated region
    $region10: #{tpu_custom_call.1} parent=1 // pred_check
      _
    $region11: #{tpu_custom_call.1} parent=1 // pred_check_branch
      %36 = sbr.rel (0) target = $region13
    $region12: #{tpu_custom_call.1} parent=1 // pred_region
      _
    $region13: #{tpu_custom_call.1} parent=1 // pred_fallthru
      _
    // Predicated region
    $region14: #{tpu_custom_call.1} parent=1 // pred_check
      _
    $region15: #{tpu_custom_call.1} parent=1 // pred_check_branch
      %38 = sbr.rel (0) target = $region17
    $region16: #{tpu_custom_call.1} parent=1 // pred_region
      _
    $region17: #{tpu_custom_call.1} parent=1 // pred_fallthru
      _
    // Predicated region
    $region18: #{tpu_custom_call.1} parent=1 // pred_check
      _
    $region19: #{tpu_custom_call.1} parent=1 // pred_check_branch
      %40 = sbr.rel (0) target = $region21
    $region20: #{tpu_custom_call.1} parent=1 // pred_region
      _
    $region21: #{tpu_custom_call.1} parent=1 // pred_fallthru
      _
    // Predicated region
    $region22: #{tpu_custom_call.1} parent=1 // pred_check
      _
    $region23: #{tpu_custom_call.1} parent=1 // pred_check_branch
      %42 = sbr.rel (0) target = $region25
    $region24: #{tpu_custom_call.1} parent=1 // pred_region
      %43 = dma.done [#allocation3], 128
    $region25: #{tpu_custom_call.1} parent=1 // pred_fallthru
      _
    // Predicated region
    $region26: #{tpu_custom_call.1} parent=1 // pred_check
      _
    $region27: #{tpu_custom_call.1} parent=1 // pred_check_branch
      %45 = sbr.rel (0) target = $region29
    $region28: #{tpu_custom_call.1} parent=1 // pred_region
      %46 = dma.done [#allocation6], 1024
    $region29: #{tpu_custom_call.1} parent=1 // pred_fallthru
      _
    %v47 = vld [vmem:[#allocation5] sm:$0xff]
    %v48 = vld [vmem:[#allocation5 + $0x8] sm:$0xff]
    %v49 = vld [vmem:[#allocation5 + $0x10] sm:$0xff]
    %v50 = vld [vmem:[#allocation5 + $0x18] sm:$0xff]
    %v51 = vld [vmem:[#allocation5 + $0x20] sm:$0xff]
    %v52 = vld [vmem:[#allocation5 + $0x28] sm:$0xff]
    %v53 = vld [vmem:[#allocation5 + $0x30] sm:$0xff]
    %v54 = vld [vmem:[#allocation5 + $0x38] sm:$0xff]
    %v55 = vld [vmem:[%s2] sm:$0x3]
    %v56 = vld [vmem:[%s3] sm:$0xff]
    %v57 = vld [vmem:[%s4] sm:$0xf]
    %v58 = vld [vmem:[#allocation2] sm:$0xff]
    %v60 = vlaneseq
    %v61 = vshrl.u32 %v60, 7
    %v62 = vsub.s32 0, %v61
    %v63 = vrot.slane %v55, %v62
    %v64 = vlaneseq
    %v65 = vshrl.u32 %v64, 7
    %v66 = vsub.s32 1, %v65
    %v67 = vrot.slane %v55, %v66
    %vm70 = vcmask 261120
    %v72 = vsel %vm70, %v58, 0
    %74 = vmatprep.subr.mxu0 %v48
    %75 = vmatpush1.msra.mxu0 %v47
    %76 = vmatprep.subr.mxu0 %v50
    %77 = vmatpush1.msra.mxu0 %v49
    %78 = vmatprep.subr.mxu0 %v52
    %79 = vmatpush1.msra.mxu0 %v51
    %80 = vmatprep.subr.mxu0 %v54
    %81 = vmatpush1.msra.mxu0 %v53
    %82 = vmatprep.subr.mxu0 0.0
    %83 = vmatpush1.msra.mxu0 0.0
    %84 = vmatprep.subr.mxu0 0.0
    %85 = vmatpush1.msra.mxu0 0.0
    %86 = vmatprep.subr.mxu0 0.0
    %87 = vmatpush1.msra.mxu0 0.0
    %88 = vmatprep.subr.mxu0 0.0
    %89 = vmatpush1.msra.mxu0 0.0
    %90 = vmatprep.subr.mxu0 0.0
    %91 = vmatpush1.msra.mxu0 0.0
    %92 = vmatprep.subr.mxu0 0.0
    %93 = vmatpush1.msra.mxu0 0.0
    %94 = vmatprep.subr.mxu0 0.0
    %95 = vmatpush1.msra.mxu0 0.0
    %96 = vmatprep.subr.mxu0 0.0
    %97 = vmatpush1.msra.mxu0 0.0
    %98 = vmatprep.subr.mxu0 0.0
    %99 = vmatpush1.msra.mxu0 0.0
    %100 = vmatprep.subr.mxu0 0.0
    %101 = vmatpush1.msra.mxu0 0.0
    %102 = vmatprep.subr.mxu0 0.0
    %103 = vmatpush1.msra.mxu0 0.0
    %104 = vmatprep.subr.mxu0 0.0
    %105 = vmatpush1.msra.mxu0 0.0
    %106 = vmatprep.subr.mxu0 0.0
    %107 = vmatpush1.msra.mxu0 0.0
    %108 = vmatprep.subr.mxu0 0.0
    %109 = vmatpush1.msra.mxu0 0.0
    %110 = vmatprep.subr.mxu0 0.0
    %111 = vmatpush1.msra.mxu0 0.0
    %112 = vmatprep.subr.mxu0 0.0
    %113 = vmatpush1.msra.mxu0 0.0
    %114 = vmatprep.subr.mxu0 0.0
    %115 = vmatpush1.msra.mxu0 0.0
    %116 = vmatprep.subr.mxu0 0.0
    %117 = vmatpush1.msra.mxu0 0.0
    %118 = vmatprep.subr.mxu0 0.0
    %119 = vmatpush1.msra.mxu0 0.0
    %120 = vmatprep.subr.mxu0 0.0
    %121 = vmatpush1.msra.mxu0 0.0
    %122 = vmatprep.subr.mxu0 0.0
    %123 = vmatpush1.msra.mxu0 0.0
    %124 = vmatprep.subr.mxu0 0.0
    %125 = vmatpush1.msra.mxu0 0.0
    %126 = vmatprep.subr.mxu0 0.0
    %127 = vmatpush1.msra.mxu0 0.0
    %128 = vmatprep.subr.mxu0 0.0
    %129 = vmatpush1.msra.mxu0 0.0
    %130 = vmatprep.subr.mxu0 0.0
    %131 = vmatpush1.msra.mxu0 0.0
    %132 = vmatprep.subr.mxu0 0.0
    %133 = vmatpush1.msra.mxu0 0.0
    %134 = vmatprep.subr.mxu0 0.0
    %135 = vmatpush1.msra.mxu0 0.0
    %136 = vmatprep.subr.mxu0 0.0
    %137 = vmatpush1.msra.mxu0 0.0
    %138 = vmatprep.mubr.f32.mxu0 0.0
    %139 = vmatmul.mubr.f32.gmra.mrb[0].mxu0 %v72
    %v140 = vpop.f32.mrb[0].mxu0
    %v141 = vadd.f32 %v63, %v140
    %v142 = vpop.f32.mrb[0].mxu0
    %v143 = vadd.f32 %v67, %v142
    %144 = vdwg.mxu0
    %v145 = vmax.f32 %v141, 0.0
    %v146 = vmax.f32 %v143, 0.0
    %148 = vset.pattern.permute.xlu0 0
    %149 = vperm.xlu0 %148, %v57
    %v150 = vpop.permute.xlu0 %149
    %v153 = vcombine.high %v56, %v56
    %155 = vmatprep.subr.mxu0 %v146
    %156 = vmatpush1.xpose.msra.mxu0 %v145
    %157 = vmatprep.subr.mxu0 0.0
    %158 = vmatpush1.xpose.msra.mxu0 0.0
    %159 = vmatprep.subr.mxu0 0.0
    %160 = vmatpush1.xpose.msra.mxu0 0.0
    %161 = vmatprep.subr.mxu0 0.0
    %162 = vmatpush1.xpose.msra.mxu0 0.0
    %163 = vmatprep.subr.mxu0 0.0
    %164 = vmatpush1.xpose.msra.mxu0 0.0
    %165 = vmatprep.subr.mxu0 0.0
    %166 = vmatpush1.xpose.msra.mxu0 0.0
    %167 = vmatprep.subr.mxu0 0.0
    %168 = vmatpush1.xpose.msra.mxu0 0.0
    %169 = vmatprep.subr.mxu0 0.0
    %170 = vmatpush1.xpose.msra.mxu0 0.0
    %171 = vmatprep.subr.mxu0 0.0
    %172 = vmatpush1.xpose.msra.mxu0 0.0
    %173 = vmatprep.subr.mxu0 0.0
    %174 = vmatpush1.xpose.msra.mxu0 0.0
    %175 = vmatprep.subr.mxu0 0.0
    %176 = vmatpush1.xpose.msra.mxu0 0.0
    %177 = vmatprep.subr.mxu0 0.0
    %178 = vmatpush1.xpose.msra.mxu0 0.0
    %179 = vmatprep.subr.mxu0 0.0
    %180 = vmatpush1.xpose.msra.mxu0 0.0
    %181 = vmatprep.subr.mxu0 0.0
    %182 = vmatpush1.xpose.msra.mxu0 0.0
    %183 = vmatprep.subr.mxu0 0.0
    %184 = vmatpush1.xpose.msra.mxu0 0.0
    %185 = vmatprep.subr.mxu0 0.0
    %186 = vmatpush1.xpose.msra.mxu0 0.0
    %187 = vmatprep.subr.mxu0 0.0
    %188 = vmatpush1.xpose.msra.mxu0 0.0
    %189 = vmatprep.subr.mxu0 0.0
    %190 = vmatpush1.xpose.msra.mxu0 0.0
    %191 = vmatprep.subr.mxu0 0.0
    %192 = vmatpush1.xpose.msra.mxu0 0.0
    %193 = vmatprep.subr.mxu0 0.0
    %194 = vmatpush1.xpose.msra.mxu0 0.0
    %195 = vmatprep.subr.mxu0 0.0
    %196 = vmatpush1.xpose.msra.mxu0 0.0
    %197 = vmatprep.subr.mxu0 0.0
    %198 = vmatpush1.xpose.msra.mxu0 0.0
    %199 = vmatprep.subr.mxu0 0.0
    %200 = vmatpush1.xpose.msra.mxu0 0.0
    %201 = vmatprep.subr.mxu0 0.0
    %202 = vmatpush1.xpose.msra.mxu0 0.0
    %203 = vmatprep.subr.mxu0 0.0
    %204 = vmatpush1.xpose.msra.mxu0 0.0
    %205 = vmatprep.subr.mxu0 0.0
    %206 = vmatpush1.xpose.msra.mxu0 0.0
    %207 = vmatprep.subr.mxu0 0.0
    %208 = vmatpush1.xpose.msra.mxu0 0.0
    %209 = vmatprep.subr.mxu0 0.0
    %210 = vmatpush1.xpose.msra.mxu0 0.0
    %211 = vmatprep.subr.mxu0 0.0
    %212 = vmatpush1.xpose.msra.mxu0 0.0
    %213 = vmatprep.subr.mxu0 0.0
    %214 = vmatpush1.xpose.msra.mxu0 0.0
    %215 = vmatprep.subr.mxu0 0.0
    %216 = vmatpush1.xpose.msra.mxu0 0.0
    %217 = vmatprep.subr.mxu0 0.0
    %218 = vmatpush1.xpose.msra.mxu0 0.0
    %219 = vmatprep.mubr.f32.mxu0 %v153
    %220 = vmatmul.mubr.f32.gmra.mrb[0].mxu0 %v56
    %v221 = vpop.f32.mrb[0].mxu0
    %v222 = vadd.f32 %v150, %v221
    %v223 = vpop.f32.mrb[0].mxu0
    %224 = vdwg.mxu0
    %vm225 = vcmask 60416
    %226 = vst.msk [vmem:[#allocation7] sm:$0xf] %vm225, %v222
    // Predicated region
    $region30: #{tpu_custom_call.1} parent=1 // pred_check
      _
    $region31: #{tpu_custom_call.1} parent=1 // pred_check_branch
      %228 = sbr.rel (0) target = $region33
    $region32: #{tpu_custom_call.1} parent=1 // pred_region
      %s230 = ssub.s32 64, 64
      %231 = vsyncadd [#allocation4], %s230
      %s233 = sshll.u32 [#allocation7], 4
      %s234 = int_to_ptr.vmem [resolvable:$true] %s233
      %236 = dma.vmem_to_hbm [thread:$0]  %s234, 64, %s5, [#allocation4]
    $region33: #{tpu_custom_call.1} parent=1 // pred_fallthru
      _
    // Predicated region
    $region34: #{tpu_custom_call.1} parent=1 // pred_check
      _
    $region35: #{tpu_custom_call.1} parent=1 // pred_check_branch
      %238 = sbr.rel (0) target = $region37
    $region36: #{tpu_custom_call.1} parent=1 // pred_region
      %239 = dma.done [#allocation4], 64
    $region37: #{tpu_custom_call.1} parent=1 // pred_fallthru
      _
    %240 = vsyncpa [#allocation3], 1
    %241 = vsyncpa [#allocation6], 1
    %242 = vsyncpa [#allocation4], 1

</llo_original>
